<compile_context>
chip_gen: v7x
topology: tpu7x:2x2x1
jax: 0.10.0
libtpu: 0.0.40
codegen_flags: <defaults>
</compile_context>

<pallas_src>
import functools

import jax
import jax.numpy as jnp
from jax.experimental import pallas as pl
from jax.experimental.pallas import tpu as pltpu


def _round_up(x: int, m: int) -> int:
    return ((x + m - 1) // m) * m


def make_actor_kernel(max_action: float):
    def actor_kernel(x_ref, w1_ref, b1_ref, w2_ref, b2_ref,
                     w3_ref, b3_ref, w4_ref, b4_ref, out_ref):
        x = x_ref[...]  # f32 [TB, in_dim]

        # fc1 + ReLU   (bf16 weights -> f32, MXU accumulates in f32)
        h = jnp.dot(x, w1_ref[...].astype(jnp.float32),
                    preferred_element_type=jnp.float32) + b1_ref[...]
        h = jnp.maximum(h, 0.0)

        # fc2 + ReLU
        h = jnp.dot(h, w2_ref[...].astype(jnp.float32),
                    preferred_element_type=jnp.float32) + b2_ref[...]
        h = jnp.maximum(h, 0.0)

        # fc3 + ReLU
        h = jnp.dot(h, w3_ref[...].astype(jnp.float32),
                    preferred_element_type=jnp.float32) + b3_ref[...]
        h = jnp.maximum(h, 0.0)

        # action_out + scaled tanh
        a = jnp.dot(h, w4_ref[...].astype(jnp.float32),
                    preferred_element_type=jnp.float32) + b4_ref[...]
        out_ref[...] = (max_action * jnp.tanh(a)).astype(out_ref.dtype)

    return actor_kernel


@functools.partial(jax.jit, static_argnames=("max_action", "tb"))
def actor_forward(x, params, max_action: float, tb: int = 512):
    """x: [B, obs+goal] float32.

    params: dict with w1..w4 stored [in, out] in bfloat16, b1..b4 as [1, out] f32.
    Returns [B, action] float32.
    """
    B, in_dim = x.shape
    hidden = params["w2"].shape[0]
    act_dim = params["w4"].shape[1]

    # Batch tile: at least one 8-row sublane group, at most `tb`.
    tile_b = min(tb, _round_up(B, 8))
    b_pad = _round_up(B, tile_b)
    if b_pad != B:
        x = jnp.pad(x, ((0, b_pad - B), (0, 0)))

    grid = (b_pad // tile_b,)

    # x / out stream per grid step; weights & biases are full-array blocks
    # (resident, re-fetched by the pipeline each step — tiny in bf16).
    x_spec = pl.BlockSpec((tile_b, in_dim), lambda i: (i, 0))
    out_spec = pl.BlockSpec((tile_b, act_dim), lambda i: (i, 0))

    def full(shape):
        return pl.BlockSpec(shape, lambda i: (0, 0))

    in_specs = [
        x_spec,
        full((in_dim, hidden)), full((1, hidden)),     # fc1
        full((hidden, hidden)), full((1, hidden)),     # fc2
        full((hidden, hidden)), full((1, hidden)),     # fc3
        full((hidden, act_dim)), full((1, act_dim)),   # action_out
    ]

    kernel = make_actor_kernel(max_action)

    out = pl.pallas_call(
        kernel,
        out_shape=jax.ShapeDtypeStruct((b_pad, act_dim), jnp.float32),
        grid=grid,
        in_specs=in_specs,
        out_specs=out_spec,
        compiler_params=pltpu.CompilerParams(
            dimension_semantics=("parallel",),
            vmem_limit_bytes=32 * 1024 * 1024,
        ),
    )(x,
      params["w1"], params["b1"],
      params["w2"], params["b2"],
      params["w3"], params["b3"],
      params["w4"], params["b4"])

    return out[:B]


def actor_reference(x, params, max_action: float):
    """Pure-JAX reference using the same (bf16-stored) weights, f32 math."""
    def w(name):
        return params[name].astype(jnp.float32)

    h = jnp.maximum(x @ w("w1") + params["b1"], 0.0)
    h = jnp.maximum(h @ w("w2") + params["b2"], 0.0)
    h = jnp.maximum(h @ w("w3") + params["b3"], 0.0)
    return max_action * jnp.tanh(h @ w("w4") + params["b4"])


def init_params(key, in_dim, hidden, act_dim):
    """Deterministic init mimicking nn.Linear U(-1/sqrt(fan_in), 1/sqrt(fan_in)).

    Weights are stored [in, out] (PyTorch weight transposed) in bfloat16;
    biases as [1, out] float32.
    """
    def linear(k, fan_in, fan_out):
        kw, kb = jax.random.split(k)
        bound = 1.0 / jnp.sqrt(fan_in)
        w = jax.random.uniform(kw, (fan_in, fan_out), jnp.float32, -bound, bound)
        b = jax.random.uniform(kb, (1, fan_out), jnp.float32, -bound, bound)
        return w.astype(jnp.bfloat16), b

    k1, k2, k3, k4 = jax.random.split(key, 4)
    w1, b1 = linear(k1, in_dim, hidden)
    w2, b2 = linear(k2, hidden, hidden)
    w3, b3 = linear(k3, hidden, hidden)
    w4, b4 = linear(k4, hidden, act_dim)
    return dict(w1=w1, b1=b1, w2=w2, b2=b2, w3=w3, b3=b3, w4=w4, b4=b4)


if __name__ == "__main__":
    # env_params: obs=10, goal=3, action=4, action_max=1.0
    obs, goal, action, action_max = 10, 3, 4, 1.0
    in_dim = obs + goal
    hidden = 256

    key = jax.random.PRNGKey(0)
    kx, kp, kx2 = jax.random.split(key, 3)
    params = init_params(kp, in_dim, hidden, action)

    # Small per-step batch (B=2): single grid step, padded to 8 rows internally.
    x_small = jax.random.normal(kx, (2, in_dim), jnp.float32)
    out_small = jax.block_until_ready(actor_forward(x_small, params, action_max))
    ref_small = actor_reference(x_small, params, action_max)
    assert out_small.shape == (2, action)
    assert jnp.allclose(out_small, ref_small, atol=1e-4, rtol=1e-4), \
        "small-batch mismatch vs reference"

    # Larger, non-multiple-of-tile batch: exercises the batch grid + padding path.
    x_big = jax.random.normal(kx2, (300, in_dim), jnp.float32)
    out_big = jax.block_until_ready(actor_forward(x_big, params, action_max, tb=128))
    ref_big = actor_reference(x_big, params, action_max)
    assert out_big.shape == (300, action)
    assert jnp.allclose(out_big, ref_big, atol=1e-4, rtol=1e-4), \
        "batched mismatch vs reference"

    print("KERNEL_OK")
</pallas_src>

<mosaic_0001>
module attributes {stable_mosaic.version = 11 : i64} {
  func.func @actor_kernel(%arg0: i32, %arg1: memref<8x13xf32, #tpu.memory_space<vmem>>, %arg2: memref<13x256xbf16, #tpu.memory_space<vmem>>, %arg3: memref<1x256xf32, #tpu.memory_space<vmem>>, %arg4: memref<256x256xbf16, #tpu.memory_space<vmem>>, %arg5: memref<1x256xf32, #tpu.memory_space<vmem>>, %arg6: memref<256x256xbf16, #tpu.memory_space<vmem>>, %arg7: memref<1x256xf32, #tpu.memory_space<vmem>>, %arg8: memref<256x4xbf16, #tpu.memory_space<vmem>>, %arg9: memref<1x4xf32, #tpu.memory_space<vmem>>, %arg10: memref<8x4xf32, #tpu.memory_space<vmem>>) attributes {dimension_semantics = [#tpu.dimension_semantics<parallel>], iteration_bounds = array<i64: 1>, scalar_prefetch = 0 : i64, scratch_operands = 0 : i64, tpu.core_type = #tpu.core_type<tc>, window_params = [{transform_indices = @transform_0, window_bounds = array<i64: 8, 13>}, {pipeline_mode = #tpu.pipeline_mode<synchronous>, transform_indices = @transform_1, window_bounds = array<i64: 13, 256>}, {pipeline_mode = #tpu.pipeline_mode<synchronous>, transform_indices = @transform_2, window_bounds = array<i64: 1, 256>}, {pipeline_mode = #tpu.pipeline_mode<synchronous>, transform_indices = @transform_3, window_bounds = array<i64: 256, 256>}, {pipeline_mode = #tpu.pipeline_mode<synchronous>, transform_indices = @transform_4, window_bounds = array<i64: 1, 256>}, {pipeline_mode = #tpu.pipeline_mode<synchronous>, transform_indices = @transform_5, window_bounds = array<i64: 256, 256>}, {pipeline_mode = #tpu.pipeline_mode<synchronous>, transform_indices = @transform_6, window_bounds = array<i64: 1, 256>}, {pipeline_mode = #tpu.pipeline_mode<synchronous>, transform_indices = @transform_7, window_bounds = array<i64: 256, 4>}, {pipeline_mode = #tpu.pipeline_mode<synchronous>, transform_indices = @transform_8, window_bounds = array<i64: 1, 4>}, {transform_indices = @transform_9, window_bounds = array<i64: 8, 4>}]} {
    %c0 = arith.constant 0 : index
    %c0_0 = arith.constant 0 : index
    %0 = vector.load %arg1[%c0, %c0_0] : memref<8x13xf32, #tpu.memory_space<vmem>>, vector<8x13xf32>
    %c0_1 = arith.constant 0 : index
    %c0_2 = arith.constant 0 : index
    %1 = vector.load %arg2[%c0_1, %c0_2] : memref<13x256xbf16, #tpu.memory_space<vmem>>, vector<13x256xbf16>
    %2 = arith.extf %1 : vector<13x256xbf16> to vector<13x256xf32>
    %cst = arith.constant dense<0.000000e+00> : vector<8x256xf32>
    %3 = tpu.matmul %0, %2, %cst {dimension_numbers = #tpu.dot_dimension_numbers<[1], [0], [0], [1], [0, 0, 1, 1], [], []>} : vector<8x13xf32>, vector<13x256xf32>, vector<8x256xf32> -> vector<8x256xf32>
    %c0_3 = arith.constant 0 : index
    %c0_4 = arith.constant 0 : index
    %4 = vector.load %arg3[%c0_3, %c0_4] : memref<1x256xf32, #tpu.memory_space<vmem>>, vector<1x256xf32>
    %5 = vector.broadcast %4 : vector<1x256xf32> to vector<8x256xf32>
    %6 = arith.addf %3, %5 : vector<8x256xf32>
    %cst_5 = arith.constant 0.000000e+00 : f32
    %7 = vector.broadcast %cst_5 : f32 to vector<8x256xf32>
    %8 = arith.maximumf %6, %7 : vector<8x256xf32>
    %c0_6 = arith.constant 0 : index
    %c0_7 = arith.constant 0 : index
    %9 = vector.load %arg4[%c0_6, %c0_7] : memref<256x256xbf16, #tpu.memory_space<vmem>>, vector<256x256xbf16>
    %10 = arith.extf %9 : vector<256x256xbf16> to vector<256x256xf32>
    %cst_8 = arith.constant dense<0.000000e+00> : vector<8x256xf32>
    %11 = tpu.matmul %8, %10, %cst_8 {dimension_numbers = #tpu.dot_dimension_numbers<[1], [0], [0], [1], [0, 0, 1, 1], [], []>} : vector<8x256xf32>, vector<256x256xf32>, vector<8x256xf32> -> vector<8x256xf32>
    %c0_9 = arith.constant 0 : index
    %c0_10 = arith.constant 0 : index
    %12 = vector.load %arg5[%c0_9, %c0_10] : memref<1x256xf32, #tpu.memory_space<vmem>>, vector<1x256xf32>
    %13 = vector.broadcast %12 : vector<1x256xf32> to vector<8x256xf32>
    %14 = arith.addf %11, %13 : vector<8x256xf32>
    %cst_11 = arith.constant 0.000000e+00 : f32
    %15 = vector.broadcast %cst_11 : f32 to vector<8x256xf32>
    %16 = arith.maximumf %14, %15 : vector<8x256xf32>
    %c0_12 = arith.constant 0 : index
    %c0_13 = arith.constant 0 : index
    %17 = vector.load %arg6[%c0_12, %c0_13] : memref<256x256xbf16, #tpu.memory_space<vmem>>, vector<256x256xbf16>
    %18 = arith.extf %17 : vector<256x256xbf16> to vector<256x256xf32>
    %cst_14 = arith.constant dense<0.000000e+00> : vector<8x256xf32>
    %19 = tpu.matmul %16, %18, %cst_14 {dimension_numbers = #tpu.dot_dimension_numbers<[1], [0], [0], [1], [0, 0, 1, 1], [], []>} : vector<8x256xf32>, vector<256x256xf32>, vector<8x256xf32> -> vector<8x256xf32>
    %c0_15 = arith.constant 0 : index
    %c0_16 = arith.constant 0 : index
    %20 = vector.load %arg7[%c0_15, %c0_16] : memref<1x256xf32, #tpu.memory_space<vmem>>, vector<1x256xf32>
    %21 = vector.broadcast %20 : vector<1x256xf32> to vector<8x256xf32>
    %22 = arith.addf %19, %21 : vector<8x256xf32>
    %cst_17 = arith.constant 0.000000e+00 : f32
    %23 = vector.broadcast %cst_17 : f32 to vector<8x256xf32>
    %24 = arith.maximumf %22, %23 : vector<8x256xf32>
    %c0_18 = arith.constant 0 : index
    %c0_19 = arith.constant 0 : index
    %25 = vector.load %arg8[%c0_18, %c0_19] : memref<256x4xbf16, #tpu.memory_space<vmem>>, vector<256x4xbf16>
    %26 = arith.extf %25 : vector<256x4xbf16> to vector<256x4xf32>
    %cst_20 = arith.constant dense<0.000000e+00> : vector<8x4xf32>
    %27 = tpu.matmul %24, %26, %cst_20 {dimension_numbers = #tpu.dot_dimension_numbers<[1], [0], [0], [1], [0, 0, 1, 1], [], []>} : vector<8x256xf32>, vector<256x4xf32>, vector<8x4xf32> -> vector<8x4xf32>
    %c0_21 = arith.constant 0 : index
    %c0_22 = arith.constant 0 : index
    %28 = vector.load %arg9[%c0_21, %c0_22] : memref<1x4xf32, #tpu.memory_space<vmem>>, vector<1x4xf32>
    %29 = vector.broadcast %28 : vector<1x4xf32> to vector<8x4xf32>
    %30 = arith.addf %27, %29 : vector<8x4xf32>
    %31 = math.tanh %30 : vector<8x4xf32>
    %cst_23 = arith.constant 1.000000e+00 : f32
    %32 = vector.broadcast %cst_23 : f32 to vector<8x4xf32>
    %33 = arith.mulf %32, %31 : vector<8x4xf32>
    %c0_24 = arith.constant 0 : index
    %c0_25 = arith.constant 0 : index
    %34 = vector.load %arg10[%c0_24, %c0_25] : memref<8x4xf32, #tpu.memory_space<vmem>>, vector<8x4xf32>
    tpu.vector_store %arg10[%c0_24, %c0_25], %33 {strides = array<i32>} : memref<8x4xf32, #tpu.memory_space<vmem>>, vector<8x4xf32>,
    return
  }
  func.func @transform_0(%arg0: i32) -> (i32, i32) {
    %c0_i32 = arith.constant 0 : i32
    %c0_i32_0 = arith.constant 0 : i32
    return %arg0, %c0_i32 : i32, i32
  }
  func.func @transform_1(%arg0: i32) -> (i32, i32) {
    %c0_i32 = arith.constant 0 : i32
    %c0_i32_0 = arith.constant 0 : i32
    %c0_i32_1 = arith.constant 0 : i32
    return %c0_i32, %c0_i32_0 : i32, i32
  }
  func.func @transform_2(%arg0: i32) -> (i32, i32) {
    %c0_i32 = arith.constant 0 : i32
    %c0_i32_0 = arith.constant 0 : i32
    %c0_i32_1 = arith.constant 0 : i32
    return %c0_i32, %c0_i32_0 : i32, i32
  }
  func.func @transform_3(%arg0: i32) -> (i32, i32) {
    %c0_i32 = arith.constant 0 : i32
    %c0_i32_0 = arith.constant 0 : i32
    %c0_i32_1 = arith.constant 0 : i32
    return %c0_i32, %c0_i32_0 : i32, i32
  }
  func.func @transform_4(%arg0: i32) -> (i32, i32) {
    %c0_i32 = arith.constant 0 : i32
    %c0_i32_0 = arith.constant 0 : i32
    %c0_i32_1 = arith.constant 0 : i32
    return %c0_i32, %c0_i32_0 : i32, i32
  }
  func.func @transform_5(%arg0: i32) -> (i32, i32) {
    %c0_i32 = arith.constant 0 : i32
    %c0_i32_0 = arith.constant 0 : i32
    %c0_i32_1 = arith.constant 0 : i32
    return %c0_i32, %c0_i32_0 : i32, i32
  }
  func.func @transform_6(%arg0: i32) -> (i32, i32) {
    %c0_i32 = arith.constant 0 : i32
    %c0_i32_0 = arith.constant 0 : i32
    %c0_i32_1 = arith.constant 0 : i32
    return %c0_i32, %c0_i32_0 : i32, i32
  }
  func.func @transform_7(%arg0: i32) -> (i32, i32) {
    %c0_i32 = arith.constant 0 : i32
    %c0_i32_0 = arith.constant 0 : i32
    %c0_i32_1 = arith.constant 0 : i32
    return %c0_i32, %c0_i32_0 : i32, i32
  }
  func.func @transform_8(%arg0: i32) -> (i32, i32) {
    %c0_i32 = arith.constant 0 : i32
    %c0_i32_0 = arith.constant 0 : i32
    %c0_i32_1 = arith.constant 0 : i32
    return %c0_i32, %c0_i32_0 : i32, i32
  }
  func.func @transform_9(%arg0: i32) -> (i32, i32) {
    %c0_i32 = arith.constant 0 : i32
    %c0_i32_0 = arith.constant 0 : i32
    return %arg0, %c0_i32 : i32, i32
  }
}

</mosaic_0001>

<llo_original>
// kernel: actor_forward.1
$region0: #{actor_forward.1}
  #allocation0 [shape = 'u32[]', space=smem, size = 0x4, offset = 0x4, fixed_abs, tag = 'smem constant byte address 0x4 - core index']
  #allocation1 [shape = 'u32[144,128]{1,0:T(1,128)}', space=vmem, size = 0x12000, scoped, tag = 'internal scratch']
  %s0 = inlined_call_operand.vmem [shape: f32[8,13], index: 0, kind: input, shape index: {}]
  %s1 = inlined_call_operand.vmem [shape: bf16[13,256], index: 1, kind: input, shape index: {}]
  %s2 = inlined_call_operand.vmem [shape: f32[1,256], index: 2, kind: input, shape index: {}]
  %s3 = inlined_call_operand.hbm [shape: bf16[256,256], index: 3, kind: input, shape index: {}]
  %s4 = inlined_call_operand.vmem [shape: f32[1,256], index: 4, kind: input, shape index: {}]
  %s5 = inlined_call_operand.hbm [shape: bf16[256,256], index: 5, kind: input, shape index: {}]
  %s6 = inlined_call_operand.vmem [shape: f32[1,256], index: 6, kind: input, shape index: {}]
  %s7 = inlined_call_operand.vmem [shape: bf16[256,4], index: 7, kind: input, shape index: {}]
  %s8 = inlined_call_operand.vmem [shape: f32[1,4], index: 8, kind: input, shape index: {}]
  %s9 = inlined_call_operand.vmem [shape: f32[8,4], index: 9, kind: output, shape index: {}]
  %s10 = sld [smem:[#allocation0]]
  $region54: #{actor_forward.1} parent=0
    _
  %s12 = ssub.s32 1, %s10
  %s13 = scalar_select 0, %s12, %s10
  $region1: #{actor_forward.1} parent=0
    #allocation2 [shape = 'u8[131072]{0}', space=vmem, size = 0x20000, scoped, tag = 'input window, operand 3, single buffered']
    #allocation3 [shape = 's32[1]{0}', space=sflag, size = 0x4, scoped, tag = 'scoped memory for actor_forward.1']
    #allocation4 [shape = 'u8[131072]{0}', space=vmem, size = 0x20000, scoped, tag = 'input window, operand 5, single buffered']
    #allocation5 [shape = 's32[1]{0}', space=sflag, size = 0x4, scoped, tag = 'scoped memory for actor_forward.1']
    %14 = vsyncpa [#allocation3], 0
    %15 = vsyncpa [#allocation5], 0
    // Predicated region
    $region2: #{actor_forward.1} parent=1 // pred_check
      _
    $region3: #{actor_forward.1} parent=1 // pred_check_branch
      %17 = sbr.rel (0) target = $region5
    $region4: #{actor_forward.1} parent=1 // pred_region
      _
    $region5: #{actor_forward.1} parent=1 // pred_fallthru
      _
    // Predicated region
    $region6: #{actor_forward.1} parent=1 // pred_check
      _
    $region7: #{actor_forward.1} parent=1 // pred_check_branch
      %19 = sbr.rel (0) target = $region9
    $region8: #{actor_forward.1} parent=1 // pred_region
      _
    $region9: #{actor_forward.1} parent=1 // pred_fallthru
      _
    // Predicated region
    $region10: #{actor_forward.1} parent=1 // pred_check
      _
    $region11: #{actor_forward.1} parent=1 // pred_check_branch
      %21 = sbr.rel (0) target = $region13
    $region12: #{actor_forward.1} parent=1 // pred_region
      _
    $region13: #{actor_forward.1} parent=1 // pred_fallthru
      _
    // Predicated region
    $region14: #{actor_forward.1} parent=1 // pred_check
      _
    $region15: #{actor_forward.1} parent=1 // pred_check_branch
      %23 = sbr.rel (0) target = $region17
    $region16: #{actor_forward.1} parent=1 // pred_region
      %s25 = ssub.s32 4096, 4096
      %26 = vsyncadd [#allocation3], %s25
      %s27 = sshll.u32 [#allocation2], 4
      %s28 = int_to_ptr.vmem [resolvable:$true] %s27
      %33 = dma.hbm_to_vmem [thread:$0]  %s3, 4096, %s28, [#allocation3], 128, 128, 8
    $region17: #{actor_forward.1} parent=1 // pred_fallthru
      _
    // Predicated region
    $region18: #{actor_forward.1} parent=1 // pred_check
      _
    $region19: #{actor_forward.1} parent=1 // pred_check_branch
      %35 = sbr.rel (0) target = $region21
    $region20: #{actor_forward.1} parent=1 // pred_region
      _
    $region21: #{actor_forward.1} parent=1 // pred_fallthru
      _
    // Predicated region
    $region22: #{actor_forward.1} parent=1 // pred_check
      _
    $region23: #{actor_forward.1} parent=1 // pred_check_branch
      %37 = sbr.rel (0) target = $region25
    $region24: #{actor_forward.1} parent=1 // pred_region
      %s39 = ssub.s32 4096, 4096
      %40 = vsyncadd [#allocation5], %s39
      %s41 = sshll.u32 [#allocation4], 4
      %s42 = int_to_ptr.vmem [resolvable:$true] %s41
      %47 = dma.hbm_to_vmem [thread:$0]  %s5, 4096, %s42, [#allocation5], 128, 128, 8
    $region25: #{actor_forward.1} parent=1 // pred_fallthru
      _
    // Predicated region
    $region26: #{actor_forward.1} parent=1 // pred_check
      _
    $region27: #{actor_forward.1} parent=1 // pred_check_branch
      %49 = sbr.rel (0) target = $region29
    $region28: #{actor_forward.1} parent=1 // pred_region
      _
    $region29: #{actor_forward.1} parent=1 // pred_fallthru
      _
    // Predicated region
    $region30: #{actor_forward.1} parent=1 // pred_check
      _
    $region31: #{actor_forward.1} parent=1 // pred_check_branch
      %51 = sbr.rel (0) target = $region33
    $region32: #{actor_forward.1} parent=1 // pred_region
      _
    $region33: #{actor_forward.1} parent=1 // pred_fallthru
      _
    // Predicated region
    $region34: #{actor_forward.1} parent=1 // pred_check
      _
    $region35: #{actor_forward.1} parent=1 // pred_check_branch
      %53 = sbr.rel (0) target = $region37
    $region36: #{actor_forward.1} parent=1 // pred_region
      _
    $region37: #{actor_forward.1} parent=1 // pred_fallthru
      _
    // Predicated region
    $region38: #{actor_forward.1} parent=1 // pred_check
      _
    $region39: #{actor_forward.1} parent=1 // pred_check_branch
      %55 = sbr.rel (0) target = $region41
    $region40: #{actor_forward.1} parent=1 // pred_region
      %56 = dma.done [#allocation3], 4096
    $region41: #{actor_forward.1} parent=1 // pred_fallthru
      _
    // Predicated region
    $region42: #{actor_forward.1} parent=1 // pred_check
      _
    $region43: #{actor_forward.1} parent=1 // pred_check_branch
      %58 = sbr.rel (0) target = $region45
    $region44: #{actor_forward.1} parent=1 // pred_region
      %59 = dma.done [#allocation5], 4096
    $region45: #{actor_forward.1} parent=1 // pred_fallthru
      _
    %v60 = vld [vmem:[%s0] sm:$0xff]
    %v61 = vld [vmem:[%s1] sm:$0xff]
    %v62 = vld [vmem:[%s1 + $0x8] sm:$0x77]
    %v63 = vunpack.c.l.bf16 %v61
    %v64 = vunpack.c.h.bf16 %v61
    %v65 = vunpack.c.l.bf16 %v62
    %v66 = vunpack.c.h.bf16 %v62
    %v67 = vld [vmem:[%s2] sm:$0x3]
    %v69 = vlaneseq
    %v70 = vshrl.u32 %v69, 7
    %v71 = vsub.s32 0, %v70
    %v72 = vrot.slane %v67, %v71
    %v73 = vlaneseq
    %v74 = vshrl.u32 %v73, 7
    %v75 = vsub.s32 1, %v74
    %v76 = vrot.slane %v67, %v75
    %vm79 = vcmask 105472
    %v81 = vsel %vm79, %v60, 0
    %vm83 = vcmask 1044480
    %v85 = vsel %vm83, %v65, 0
    %v88 = vsel %vm83, %v66, 0
    %90 = vmatprep.subr.mxu0 %v64
    %91 = vmatpush1.msra.mxu0 %v63
    %92 = vmatprep.subr.mxu0 %v88
    %93 = vmatpush1.msra.mxu0 %v85
    %94 = vmatprep.subr.mxu0 0.0
    %95 = vmatpush1.msra.mxu0 0.0
    %96 = vmatprep.subr.mxu0 0.0
    %97 = vmatpush1.msra.mxu0 0.0
    %98 = vmatprep.subr.mxu0 0.0
    %99 = vmatpush1.msra.mxu0 0.0
    %100 = vmatprep.subr.mxu0 0.0
    %101 = vmatpush1.msra.mxu0 0.0
    %102 = vmatprep.subr.mxu0 0.0
    %103 = vmatpush1.msra.mxu0 0.0
    %104 = vmatprep.subr.mxu0 0.0
    %105 = vmatpush1.msra.mxu0 0.0
    %106 = vmatprep.subr.mxu0 0.0
    %107 = vmatpush1.msra.mxu0 0.0
    %108 = vmatprep.subr.mxu0 0.0
    %109 = vmatpush1.msra.mxu0 0.0
    %110 = vmatprep.subr.mxu0 0.0
    %111 = vmatpush1.msra.mxu0 0.0
    %112 = vmatprep.subr.mxu0 0.0
    %113 = vmatpush1.msra.mxu0 0.0
    %114 = vmatprep.subr.mxu0 0.0
    %115 = vmatpush1.msra.mxu0 0.0
    %116 = vmatprep.subr.mxu0 0.0
    %117 = vmatpush1.msra.mxu0 0.0
    %118 = vmatprep.subr.mxu0 0.0
    %119 = vmatpush1.msra.mxu0 0.0
    %120 = vmatprep.subr.mxu0 0.0
    %121 = vmatpush1.msra.mxu0 0.0
    %122 = vmatprep.subr.mxu0 0.0
    %123 = vmatpush1.msra.mxu0 0.0
    %124 = vmatprep.subr.mxu0 0.0
    %125 = vmatpush1.msra.mxu0 0.0
    %126 = vmatprep.subr.mxu0 0.0
    %127 = vmatpush1.msra.mxu0 0.0
    %128 = vmatprep.subr.mxu0 0.0
    %129 = vmatpush1.msra.mxu0 0.0
    %130 = vmatprep.subr.mxu0 0.0
    %131 = vmatpush1.msra.mxu0 0.0
    %132 = vmatprep.subr.mxu0 0.0
    %133 = vmatpush1.msra.mxu0 0.0
    %134 = vmatprep.subr.mxu0 0.0
    %135 = vmatpush1.msra.mxu0 0.0
    %136 = vmatprep.subr.mxu0 0.0
    %137 = vmatpush1.msra.mxu0 0.0
    %138 = vmatprep.subr.mxu0 0.0
    %139 = vmatpush1.msra.mxu0 0.0
    %140 = vmatprep.subr.mxu0 0.0
    %141 = vmatpush1.msra.mxu0 0.0
    %142 = vmatprep.subr.mxu0 0.0
    %143 = vmatpush1.msra.mxu0 0.0
    %144 = vmatprep.subr.mxu0 0.0
    %145 = vmatpush1.msra.mxu0 0.0
    %146 = vmatprep.subr.mxu0 0.0
    %147 = vmatpush1.msra.mxu0 0.0
    %148 = vmatprep.subr.mxu0 0.0
    %149 = vmatpush1.msra.mxu0 0.0
    %150 = vmatprep.subr.mxu0 0.0
    %151 = vmatpush1.msra.mxu0 0.0
    %152 = vmatprep.subr.mxu0 0.0
    %153 = vmatpush1.msra.mxu0 0.0
    %154 = vmatprep.mubr.f32.mxu0 0.0
    %155 = vmatmul.mubr.f32.gmra.mrb[0].mxu0 %v81
    %v156 = vpop.f32.mrb[0].mxu0
    %v157 = vadd.f32 %v72, %v156
    %v158 = vpop.f32.mrb[0].mxu0
    %v159 = vadd.f32 %v76, %v158
    %160 = vdwg.mxu0
    %v161 = vmax.f32 %v157, 0.0
    %v162 = vmax.f32 %v159, 0.0
    %v163 = vld [vmem:[#allocation2] sm:$0xff]
    %v164 = vld [vmem:[#allocation2 + $0x8] sm:$0xff]
    %v165 = vld [vmem:[#allocation2 + $0x10] sm:$0xff]
    %v166 = vld [vmem:[#allocation2 + $0x18] sm:$0xff]
    %v167 = vld [vmem:[#allocation2 + $0x20] sm:$0xff]
    %v168 = vld [vmem:[#allocation2 + $0x28] sm:$0xff]
    %v169 = vld [vmem:[#allocation2 + $0x30] sm:$0xff]
    %v170 = vld [vmem:[#allocation2 + $0x38] sm:$0xff]
    %v171 = vld [vmem:[#allocation2 + $0x40] sm:$0xff]
    %v172 = vld [vmem:[#allocation2 + $0x48] sm:$0xff]
    %v173 = vld [vmem:[#allocation2 + $0x50] sm:$0xff]
    %v174 = vld [vmem:[#allocation2 + $0x58] sm:$0xff]
    %v175 = vld [vmem:[#allocation2 + $0x60] sm:$0xff]
    %v176 = vld [vmem:[#allocation2 + $0x68] sm:$0xff]
    %v177 = vld [vmem:[#allocation2 + $0x70] sm:$0xff]
    %v178 = vld [vmem:[#allocation2 + $0x78] sm:$0xff]
    %v179 = vld [vmem:[#allocation2 + $0x80] sm:$0xff]
    %v180 = vld [vmem:[#allocation2 + $0x88] sm:$0xff]
    %v181 = vld [vmem:[#allocation2 + $0x90] sm:$0xff]
    %v182 = vld [vmem:[#allocation2 + $0x98] sm:$0xff]
    %v183 = vld [vmem:[#allocation2 + $0xa0] sm:$0xff]
    %v184 = vld [vmem:[#allocation2 + $0xa8] sm:$0xff]
    %v185 = vld [vmem:[#allocation2 + $0xb0] sm:$0xff]
    %v186 = vld [vmem:[#allocation2 + $0xb8] sm:$0xff]
    %v187 = vld [vmem:[#allocation2 + $0xc0] sm:$0xff]
    %v188 = vld [vmem:[#allocation2 + $0xc8] sm:$0xff]
    %v189 = vld [vmem:[#allocation2 + $0xd0] sm:$0xff]
    %v190 = vld [vmem:[#allocation2 + $0xd8] sm:$0xff]
    %v191 = vld [vmem:[#allocation2 + $0xe0] sm:$0xff]
    %v192 = vld [vmem:[#allocation2 + $0xe8] sm:$0xff]
    %v193 = vld [vmem:[#allocation2 + $0xf0] sm:$0xff]
    %v194 = vld [vmem:[#allocation2 + $0xf8] sm:$0xff]
    %v195 = vunpack.c.l.bf16 %v163
    %v196 = vunpack.c.h.bf16 %v163
    %v197 = vunpack.c.l.bf16 %v164
    %v198 = vunpack.c.h.bf16 %v164
    %v199 = vunpack.c.l.bf16 %v165
    %v200 = vunpack.c.h.bf16 %v165
    %v201 = vunpack.c.l.bf16 %v166
    %v202 = vunpack.c.h.bf16 %v166
    %v203 = vunpack.c.l.bf16 %v167
    %v204 = vunpack.c.h.bf16 %v167
    %v205 = vunpack.c.l.bf16 %v168
    %v206 = vunpack.c.h.bf16 %v168
    %v207 = vunpack.c.l.bf16 %v169
    %v208 = vunpack.c.h.bf16 %v169
    %v209 = vunpack.c.l.bf16 %v170
    %v210 = vunpack.c.h.bf16 %v170
    %v211 = vunpack.c.l.bf16 %v171
    %v212 = vunpack.c.h.bf16 %v171
    %v213 = vunpack.c.l.bf16 %v172
    %v214 = vunpack.c.h.bf16 %v172
    %v215 = vunpack.c.l.bf16 %v173
    %v216 = vunpack.c.h.bf16 %v173
    %v217 = vunpack.c.l.bf16 %v174
    %v218 = vunpack.c.h.bf16 %v174
    %v219 = vunpack.c.l.bf16 %v175
    %v220 = vunpack.c.h.bf16 %v175
    %v221 = vunpack.c.l.bf16 %v176
    %v222 = vunpack.c.h.bf16 %v176
    %v223 = vunpack.c.l.bf16 %v177
    %v224 = vunpack.c.h.bf16 %v177
    %v225 = vunpack.c.l.bf16 %v178
    %v226 = vunpack.c.h.bf16 %v178
    %v227 = vunpack.c.l.bf16 %v179
    %v228 = vunpack.c.h.bf16 %v179
    %v229 = vunpack.c.l.bf16 %v180
    %v230 = vunpack.c.h.bf16 %v180
    %v231 = vunpack.c.l.bf16 %v181
    %v232 = vunpack.c.h.bf16 %v181
    %v233 = vunpack.c.l.bf16 %v182
    %v234 = vunpack.c.h.bf16 %v182
    %v235 = vunpack.c.l.bf16 %v183
    %v236 = vunpack.c.h.bf16 %v183
    %v237 = vunpack.c.l.bf16 %v184
    %v238 = vunpack.c.h.bf16 %v184
    %v239 = vunpack.c.l.bf16 %v185
    %v240 = vunpack.c.h.bf16 %v185
    %v241 = vunpack.c.l.bf16 %v186
    %v242 = vunpack.c.h.bf16 %v186
    %v243 = vunpack.c.l.bf16 %v187
    %v244 = vunpack.c.h.bf16 %v187
    %v245 = vunpack.c.l.bf16 %v188
    %v246 = vunpack.c.h.bf16 %v188
    %v247 = vunpack.c.l.bf16 %v189
    %v248 = vunpack.c.h.bf16 %v189
    %v249 = vunpack.c.l.bf16 %v190
    %v250 = vunpack.c.h.bf16 %v190
    %v251 = vunpack.c.l.bf16 %v191
    %v252 = vunpack.c.h.bf16 %v191
    %v253 = vunpack.c.l.bf16 %v192
    %v254 = vunpack.c.h.bf16 %v192
    %v255 = vunpack.c.l.bf16 %v193
    %v256 = vunpack.c.h.bf16 %v193
    %v257 = vunpack.c.l.bf16 %v194
    %v258 = vunpack.c.h.bf16 %v194
    %v259 = vld [vmem:[%s4] sm:$0x3]
    %v261 = vlaneseq
    %v262 = vshrl.u32 %v261, 7
    %v263 = vsub.s32 0, %v262
    %v264 = vrot.slane %v259, %v263
    %v265 = vlaneseq
    %v266 = vshrl.u32 %v265, 7
    %v267 = vsub.s32 1, %v266
    %v268 = vrot.slane %v259, %v267
    %271 = vmatprep.subr.mxu0 %v196
    %272 = vmatpush1.msra.mxu0 %v195
    %273 = vmatprep.subr.mxu0 %v198
    %274 = vmatpush1.msra.mxu0 %v197
    %275 = vmatprep.subr.mxu0 %v200
    %276 = vmatpush1.msra.mxu0 %v199
    %277 = vmatprep.subr.mxu0 %v202
    %278 = vmatpush1.msra.mxu0 %v201
    %279 = vmatprep.subr.mxu0 %v204
    %280 = vmatpush1.msra.mxu0 %v203
    %281 = vmatprep.subr.mxu0 %v206
    %282 = vmatpush1.msra.mxu0 %v205
    %283 = vmatprep.subr.mxu0 %v208
    %284 = vmatpush1.msra.mxu0 %v207
    %285 = vmatprep.subr.mxu0 %v210
    %286 = vmatpush1.msra.mxu0 %v209
    %287 = vmatprep.subr.mxu0 %v212
    %288 = vmatpush1.msra.mxu0 %v211
    %289 = vmatprep.subr.mxu0 %v214
    %290 = vmatpush1.msra.mxu0 %v213
    %291 = vmatprep.subr.mxu0 %v216
    %292 = vmatpush1.msra.mxu0 %v215
    %293 = vmatprep.subr.mxu0 %v218
    %294 = vmatpush1.msra.mxu0 %v217
    %295 = vmatprep.subr.mxu0 %v220
    %296 = vmatpush1.msra.mxu0 %v219
    %297 = vmatprep.subr.mxu0 %v222
    %298 = vmatpush1.msra.mxu0 %v221
    %299 = vmatprep.subr.mxu0 %v224
    %300 = vmatpush1.msra.mxu0 %v223
    %301 = vmatprep.subr.mxu0 %v226
    %302 = vmatpush1.msra.mxu0 %v225
    %303 = vmatprep.subr.mxu0 %v228
    %304 = vmatpush1.msra.mxu0 %v227
    %305 = vmatprep.subr.mxu0 %v230
    %306 = vmatpush1.msra.mxu0 %v229
    %307 = vmatprep.subr.mxu0 %v232
    %308 = vmatpush1.msra.mxu0 %v231
    %309 = vmatprep.subr.mxu0 %v234
    %310 = vmatpush1.msra.mxu0 %v233
    %311 = vmatprep.subr.mxu0 %v236
    %312 = vmatpush1.msra.mxu0 %v235
    %313 = vmatprep.subr.mxu0 %v238
    %314 = vmatpush1.msra.mxu0 %v237
    %315 = vmatprep.subr.mxu0 %v240
    %316 = vmatpush1.msra.mxu0 %v239
    %317 = vmatprep.subr.mxu0 %v242
    %318 = vmatpush1.msra.mxu0 %v241
    %319 = vmatprep.subr.mxu0 %v244
    %320 = vmatpush1.msra.mxu0 %v243
    %321 = vmatprep.subr.mxu0 %v246
    %322 = vmatpush1.msra.mxu0 %v245
    %323 = vmatprep.subr.mxu0 %v248
    %324 = vmatpush1.msra.mxu0 %v247
    %325 = vmatprep.subr.mxu0 %v250
    %326 = vmatpush1.msra.mxu0 %v249
    %327 = vmatprep.subr.mxu0 %v252
    %328 = vmatpush1.msra.mxu0 %v251
    %329 = vmatprep.subr.mxu0 %v254
    %330 = vmatpush1.msra.mxu0 %v253
    %331 = vmatprep.subr.mxu0 %v256
    %332 = vmatpush1.msra.mxu0 %v255
    %333 = vmatprep.subr.mxu0 %v258
    %334 = vmatpush1.msra.mxu0 %v257
    %335 = vmatprep.mubr.f32.mxu0 %v162
    %336 = vmatmul.mubr.f32.gmra.mrb[0].mxu0 %v161
    %v337 = vpop.f32.mrb[0].mxu0
    %v338 = vadd.f32 %v264, %v337
    %v339 = vpop.f32.mrb[0].mxu0
    %v340 = vadd.f32 %v268, %v339
    %341 = vdwg.mxu0
    %v342 = vmax.f32 %v338, 0.0
    %v343 = vmax.f32 %v340, 0.0
    %v344 = vld [vmem:[#allocation4] sm:$0xff]
    %v345 = vld [vmem:[#allocation4 + $0x8] sm:$0xff]
    %v346 = vld [vmem:[#allocation4 + $0x10] sm:$0xff]
    %v347 = vld [vmem:[#allocation4 + $0x18] sm:$0xff]
    %v348 = vld [vmem:[#allocation4 + $0x20] sm:$0xff]
    %v349 = vld [vmem:[#allocation4 + $0x28] sm:$0xff]
    %v350 = vld [vmem:[#allocation4 + $0x30] sm:$0xff]
    %v351 = vld [vmem:[#allocation4 + $0x38] sm:$0xff]
    %v352 = vld [vmem:[#allocation4 + $0x40] sm:$0xff]
    %v353 = vld [vmem:[#allocation4 + $0x48] sm:$0xff]
    %v354 = vld [vmem:[#allocation4 + $0x50] sm:$0xff]
    %v355 = vld [vmem:[#allocation4 + $0x58] sm:$0xff]
    %v356 = vld [vmem:[#allocation4 + $0x60] sm:$0xff]
    %v357 = vld [vmem:[#allocation4 + $0x68] sm:$0xff]
    %v358 = vld [vmem:[#allocation4 + $0x70] sm:$0xff]
    %v359 = vld [vmem:[#allocation4 + $0x78] sm:$0xff]
    %v360 = vld [vmem:[#allocation4 + $0x80] sm:$0xff]
    %v361 = vld [vmem:[#allocation4 + $0x88] sm:$0xff]
    %v362 = vld [vmem:[#allocation4 + $0x90] sm:$0xff]
    %v363 = vld [vmem:[#allocation4 + $0x98] sm:$0xff]
    %v364 = vld [vmem:[#allocation4 + $0xa0] sm:$0xff]
    %v365 = vld [vmem:[#allocation4 + $0xa8] sm:$0xff]
    %v366 = vld [vmem:[#allocation4 + $0xb0] sm:$0xff]
    %v367 = vld [vmem:[#allocation4 + $0xb8] sm:$0xff]
    %v368 = vld [vmem:[#allocation4 + $0xc0] sm:$0xff]
    %v369 = vld [vmem:[#allocation4 + $0xc8] sm:$0xff]
    %v370 = vld [vmem:[#allocation4 + $0xd0] sm:$0xff]
    %v371 = vld [vmem:[#allocation4 + $0xd8] sm:$0xff]
    %v372 = vld [vmem:[#allocation4 + $0xe0] sm:$0xff]
    %v373 = vld [vmem:[#allocation4 + $0xe8] sm:$0xff]
    %v374 = vld [vmem:[#allocation4 + $0xf0] sm:$0xff]
    %v375 = vld [vmem:[#allocation4 + $0xf8] sm:$0xff]
    %v376 = vunpack.c.l.bf16 %v344
    %v377 = vunpack.c.h.bf16 %v344
    %v378 = vunpack.c.l.bf16 %v345
    %v379 = vunpack.c.h.bf16 %v345
    %v380 = vunpack.c.l.bf16 %v346
    %v381 = vunpack.c.h.bf16 %v346
    %v382 = vunpack.c.l.bf16 %v347
    %v383 = vunpack.c.h.bf16 %v347
    %v384 = vunpack.c.l.bf16 %v348
    %v385 = vunpack.c.h.bf16 %v348
    %v386 = vunpack.c.l.bf16 %v349
    %v387 = vunpack.c.h.bf16 %v349
    %v388 = vunpack.c.l.bf16 %v350
    %v389 = vunpack.c.h.bf16 %v350
    %v390 = vunpack.c.l.bf16 %v351
    %v391 = vunpack.c.h.bf16 %v351
    %v392 = vunpack.c.l.bf16 %v352
    %v393 = vunpack.c.h.bf16 %v352
    %v394 = vunpack.c.l.bf16 %v353
    %v395 = vunpack.c.h.bf16 %v353
    %v396 = vunpack.c.l.bf16 %v354
    %v397 = vunpack.c.h.bf16 %v354
    %v398 = vunpack.c.l.bf16 %v355
    %v399 = vunpack.c.h.bf16 %v355
    %v400 = vunpack.c.l.bf16 %v356
    %v401 = vunpack.c.h.bf16 %v356
    %v402 = vunpack.c.l.bf16 %v357
    %v403 = vunpack.c.h.bf16 %v357
    %v404 = vunpack.c.l.bf16 %v358
    %v405 = vunpack.c.h.bf16 %v358
    %v406 = vunpack.c.l.bf16 %v359
    %v407 = vunpack.c.h.bf16 %v359
    %v408 = vunpack.c.l.bf16 %v360
    %v409 = vunpack.c.h.bf16 %v360
    %v410 = vunpack.c.l.bf16 %v361
    %v411 = vunpack.c.h.bf16 %v361
    %v412 = vunpack.c.l.bf16 %v362
    %v413 = vunpack.c.h.bf16 %v362
    %v414 = vunpack.c.l.bf16 %v363
    %v415 = vunpack.c.h.bf16 %v363
    %v416 = vunpack.c.l.bf16 %v364
    %v417 = vunpack.c.h.bf16 %v364
    %v418 = vunpack.c.l.bf16 %v365
    %v419 = vunpack.c.h.bf16 %v365
    %v420 = vunpack.c.l.bf16 %v366
    %v421 = vunpack.c.h.bf16 %v366
    %v422 = vunpack.c.l.bf16 %v367
    %v423 = vunpack.c.h.bf16 %v367
    %v424 = vunpack.c.l.bf16 %v368
    %v425 = vunpack.c.h.bf16 %v368
    %v426 = vunpack.c.l.bf16 %v369
    %v427 = vunpack.c.h.bf16 %v369
    %v428 = vunpack.c.l.bf16 %v370
    %v429 = vunpack.c.h.bf16 %v370
    %v430 = vunpack.c.l.bf16 %v371
    %v431 = vunpack.c.h.bf16 %v371
    %v432 = vunpack.c.l.bf16 %v372
    %v433 = vunpack.c.h.bf16 %v372
    %v434 = vunpack.c.l.bf16 %v373
    %v435 = vunpack.c.h.bf16 %v373
    %v436 = vunpack.c.l.bf16 %v374
    %v437 = vunpack.c.h.bf16 %v374
    %v438 = vunpack.c.l.bf16 %v375
    %v439 = vunpack.c.h.bf16 %v375
    %v440 = vld [vmem:[%s6] sm:$0x3]
    %v442 = vlaneseq
    %v443 = vshrl.u32 %v442, 7
    %v444 = vsub.s32 0, %v443
    %v445 = vrot.slane %v440, %v444
    %v446 = vlaneseq
    %v447 = vshrl.u32 %v446, 7
    %v448 = vsub.s32 1, %v447
    %v449 = vrot.slane %v440, %v448
    %452 = vmatprep.subr.mxu0 %v377
    %453 = vmatpush1.msra.mxu0 %v376
    %454 = vmatprep.subr.mxu0 %v379
    %455 = vmatpush1.msra.mxu0 %v378
    %456 = vmatprep.subr.mxu0 %v381
    %457 = vmatpush1.msra.mxu0 %v380
    %458 = vmatprep.subr.mxu0 %v383
    %459 = vmatpush1.msra.mxu0 %v382
    %460 = vmatprep.subr.mxu0 %v385
    %461 = vmatpush1.msra.mxu0 %v384
    %462 = vmatprep.subr.mxu0 %v387
    %463 = vmatpush1.msra.mxu0 %v386
    %464 = vmatprep.subr.mxu0 %v389
    %465 = vmatpush1.msra.mxu0 %v388
    %466 = vmatprep.subr.mxu0 %v391
    %467 = vmatpush1.msra.mxu0 %v390
    %468 = vmatprep.subr.mxu0 %v393
    %469 = vmatpush1.msra.mxu0 %v392
    %470 = vmatprep.subr.mxu0 %v395
    %471 = vmatpush1.msra.mxu0 %v394
    %472 = vmatprep.subr.mxu0 %v397
    %473 = vmatpush1.msra.mxu0 %v396
    %474 = vmatprep.subr.mxu0 %v399
    %475 = vmatpush1.msra.mxu0 %v398
    %476 = vmatprep.subr.mxu0 %v401
    %477 = vmatpush1.msra.mxu0 %v400
    %478 = vmatprep.subr.mxu0 %v403
    %479 = vmatpush1.msra.mxu0 %v402
    %480 = vmatprep.subr.mxu0 %v405
    %481 = vmatpush1.msra.mxu0 %v404
    %482 = vmatprep.subr.mxu0 %v407
    %483 = vmatpush1.msra.mxu0 %v406
    %484 = vmatprep.subr.mxu0 %v409
    %485 = vmatpush1.msra.mxu0 %v408
    %486 = vmatprep.subr.mxu0 %v411
    %487 = vmatpush1.msra.mxu0 %v410
    %488 = vmatprep.subr.mxu0 %v413
    %489 = vmatpush1.msra.mxu0 %v412
    %490 = vmatprep.subr.mxu0 %v415
    %491 = vmatpush1.msra.mxu0 %v414
    %492 = vmatprep.subr.mxu0 %v417
    %493 = vmatpush1.msra.mxu0 %v416
    %494 = vmatprep.subr.mxu0 %v419
    %495 = vmatpush1.msra.mxu0 %v418
    %496 = vmatprep.subr.mxu0 %v421
    %497 = vmatpush1.msra.mxu0 %v420
    %498 = vmatprep.subr.mxu0 %v423
    %499 = vmatpush1.msra.mxu0 %v422
    %500 = vmatprep.subr.mxu0 %v425
    %501 = vmatpush1.msra.mxu0 %v424
    %502 = vmatprep.subr.mxu0 %v427
    %503 = vmatpush1.msra.mxu0 %v426
    %504 = vmatprep.subr.mxu0 %v429
    %505 = vmatpush1.msra.mxu0 %v428
    %506 = vmatprep.subr.mxu0 %v431
    %507 = vmatpush1.msra.mxu0 %v430
    %508 = vmatprep.subr.mxu0 %v433
    %509 = vmatpush1.msra.mxu0 %v432
    %510 = vmatprep.subr.mxu0 %v435
    %511 = vmatpush1.msra.mxu0 %v434
    %512 = vmatprep.subr.mxu0 %v437
    %513 = vmatpush1.msra.mxu0 %v436
    %514 = vmatprep.subr.mxu0 %v439
    %515 = vmatpush1.msra.mxu0 %v438
    %516 = vmatprep.mubr.f32.mxu0 %v343
    %517 = vmatmul.mubr.f32.gmra.mrb[0].mxu0 %v342
    %v518 = vpop.f32.mrb[0].mxu0
    %v519 = vadd.f32 %v445, %v518
    %v520 = vpop.f32.mrb[0].mxu0
    %v521 = vadd.f32 %v449, %v520
    %522 = vdwg.mxu0
    %v523 = vmax.f32 %v519, 0.0
    %v524 = vmax.f32 %v521, 0.0
    %v525 = vld [vmem:[%s7] sm:$0xf]
    %v526 = vld [vmem:[%s7 + $0x4] sm:$0xf]
    %v527 = vld [vmem:[%s7 + $0x8] sm:$0xf]
    %v528 = vld [vmem:[%s7 + $0xc] sm:$0xf]
    %v529 = vld [vmem:[%s7 + $0x10] sm:$0xf]
    %v530 = vld [vmem:[%s7 + $0x14] sm:$0xf]
    %v531 = vld [vmem:[%s7 + $0x18] sm:$0xf]
    %v532 = vld [vmem:[%s7 + $0x1c] sm:$0xf]
    %v533 = vld [vmem:[%s7 + $0x20] sm:$0xf]
    %v534 = vld [vmem:[%s7 + $0x24] sm:$0xf]
    %v535 = vld [vmem:[%s7 + $0x28] sm:$0xf]
    %v536 = vld [vmem:[%s7 + $0x2c] sm:$0xf]
    %v537 = vld [vmem:[%s7 + $0x30] sm:$0xf]
    %v538 = vld [vmem:[%s7 + $0x34] sm:$0xf]
    %v539 = vld [vmem:[%s7 + $0x38] sm:$0xf]
    %v540 = vld [vmem:[%s7 + $0x3c] sm:$0xf]
    %v541 = vld [vmem:[%s7 + $0x40] sm:$0xf]
    %v542 = vld [vmem:[%s7 + $0x44] sm:$0xf]
    %v543 = vld [vmem:[%s7 + $0x48] sm:$0xf]
    %v544 = vld [vmem:[%s7 + $0x4c] sm:$0xf]
    %v545 = vld [vmem:[%s7 + $0x50] sm:$0xf]
    %v546 = vld [vmem:[%s7 + $0x54] sm:$0xf]
    %v547 = vld [vmem:[%s7 + $0x58] sm:$0xf]
    %v548 = vld [vmem:[%s7 + $0x5c] sm:$0xf]
    %v549 = vld [vmem:[%s7 + $0x60] sm:$0xf]
    %v550 = vld [vmem:[%s7 + $0x64] sm:$0xf]
    %v551 = vld [vmem:[%s7 + $0x68] sm:$0xf]
    %v552 = vld [vmem:[%s7 + $0x6c] sm:$0xf]
    %v553 = vld [vmem:[%s7 + $0x70] sm:$0xf]
    %v554 = vld [vmem:[%s7 + $0x74] sm:$0xf]
    %v555 = vld [vmem:[%s7 + $0x78] sm:$0xf]
    %v556 = vld [vmem:[%s7 + $0x7c] sm:$0xf]
    %v557 = vunpack.c.l.bf16 %v525
    %v558 = vunpack.c.l.bf16 %v526
    %v559 = vunpack.c.l.bf16 %v527
    %v560 = vunpack.c.l.bf16 %v528
    %v561 = vunpack.c.l.bf16 %v529
    %v562 = vunpack.c.l.bf16 %v530
    %v563 = vunpack.c.l.bf16 %v531
    %v564 = vunpack.c.l.bf16 %v532
    %v565 = vunpack.c.l.bf16 %v533
    %v566 = vunpack.c.l.bf16 %v534
    %v567 = vunpack.c.l.bf16 %v535
    %v568 = vunpack.c.l.bf16 %v536
    %v569 = vunpack.c.l.bf16 %v537
    %v570 = vunpack.c.l.bf16 %v538
    %v571 = vunpack.c.l.bf16 %v539
    %v572 = vunpack.c.l.bf16 %v540
    %v573 = vunpack.c.l.bf16 %v541
    %v574 = vunpack.c.l.bf16 %v542
    %v575 = vunpack.c.l.bf16 %v543
    %v576 = vunpack.c.l.bf16 %v544
    %v577 = vunpack.c.l.bf16 %v545
    %v578 = vunpack.c.l.bf16 %v546
    %v579 = vunpack.c.l.bf16 %v547
    %v580 = vunpack.c.l.bf16 %v548
    %v581 = vunpack.c.l.bf16 %v549
    %v582 = vunpack.c.l.bf16 %v550
    %v583 = vunpack.c.l.bf16 %v551
    %v584 = vunpack.c.l.bf16 %v552
    %v585 = vunpack.c.l.bf16 %v553
    %v586 = vunpack.c.l.bf16 %v554
    %v587 = vunpack.c.l.bf16 %v555
    %v588 = vunpack.c.l.bf16 %v556
    %v589 = vld [vmem:[%s8] sm:$0x1]
    %v591 = vlaneseq
    %v592 = vshrl.u32 %v591, 7
    %v593 = vsub.s32 0, %v592
    %v594 = vrot.slane %v589, %v593
    %596 = vmatprep.subr.mxu0 0.0
    %597 = vmatpush1.msra.mxu0 %v557
    %598 = vmatprep.subr.mxu0 0.0
    %599 = vmatpush1.msra.mxu0 %v558
    %600 = vmatprep.subr.mxu0 0.0
    %601 = vmatpush1.msra.mxu0 %v559
    %602 = vmatprep.subr.mxu0 0.0
    %603 = vmatpush1.msra.mxu0 %v560
    %604 = vmatprep.subr.mxu0 0.0
    %605 = vmatpush1.msra.mxu0 %v561
    %606 = vmatprep.subr.mxu0 0.0
    %607 = vmatpush1.msra.mxu0 %v562
    %608 = vmatprep.subr.mxu0 0.0
    %609 = vmatpush1.msra.mxu0 %v563
    %610 = vmatprep.subr.mxu0 0.0
    %611 = vmatpush1.msra.mxu0 %v564
    %612 = vmatprep.subr.mxu0 0.0
    %613 = vmatpush1.msra.mxu0 %v565
    %614 = vmatprep.subr.mxu0 0.0
    %615 = vmatpush1.msra.mxu0 %v566
    %616 = vmatprep.subr.mxu0 0.0
    %617 = vmatpush1.msra.mxu0 %v567
    %618 = vmatprep.subr.mxu0 0.0
    %619 = vmatpush1.msra.mxu0 %v568
    %620 = vmatprep.subr.mxu0 0.0
    %621 = vmatpush1.msra.mxu0 %v569
    %622 = vmatprep.subr.mxu0 0.0
    %623 = vmatpush1.msra.mxu0 %v570
    %624 = vmatprep.subr.mxu0 0.0
    %625 = vmatpush1.msra.mxu0 %v571
    %626 = vmatprep.subr.mxu0 0.0
    %627 = vmatpush1.msra.mxu0 %v572
    %628 = vmatprep.subr.mxu0 0.0
    %629 = vmatpush1.msra.mxu0 %v573
    %630 = vmatprep.subr.mxu0 0.0
    %631 = vmatpush1.msra.mxu0 %v574
    %632 = vmatprep.subr.mxu0 0.0
    %633 = vmatpush1.msra.mxu0 %v575
    %634 = vmatprep.subr.mxu0 0.0
    %635 = vmatpush1.msra.mxu0 %v576
    %636 = vmatprep.subr.mxu0 0.0
    %637 = vmatpush1.msra.mxu0 %v577
    %638 = vmatprep.subr.mxu0 0.0
    %639 = vmatpush1.msra.mxu0 %v578
    %640 = vmatprep.subr.mxu0 0.0
    %641 = vmatpush1.msra.mxu0 %v579
    %642 = vmatprep.subr.mxu0 0.0
    %643 = vmatpush1.msra.mxu0 %v580
    %644 = vmatprep.subr.mxu0 0.0
    %645 = vmatpush1.msra.mxu0 %v581
    %646 = vmatprep.subr.mxu0 0.0
    %647 = vmatpush1.msra.mxu0 %v582
    %648 = vmatprep.subr.mxu0 0.0
    %649 = vmatpush1.msra.mxu0 %v583
    %650 = vmatprep.subr.mxu0 0.0
    %651 = vmatpush1.msra.mxu0 %v584
    %652 = vmatprep.subr.mxu0 0.0
    %653 = vmatpush1.msra.mxu0 %v585
    %654 = vmatprep.subr.mxu0 0.0
    %655 = vmatpush1.msra.mxu0 %v586
    %656 = vmatprep.subr.mxu0 0.0
    %657 = vmatpush1.msra.mxu0 %v587
    %658 = vmatprep.subr.mxu0 0.0
    %659 = vmatpush1.msra.mxu0 %v588
    %660 = vmatprep.mubr.f32.mxu0 %v524
    %661 = vmatmul.mubr.f32.gmra.mrb[0].mxu0 %v523
    %v662 = vpop.f32.mrb[0].mxu0
    %v663 = vadd.f32 %v594, %v662
    %v664 = vpop.f32.mrb[0].mxu0
    %665 = vdwg.mxu0
    %v666 = vtanh.pop %v663
    %vm667 = vcmask 31744
    %668 = vst.msk [vmem:[%s9] sm:$0xff] %vm667, %v666
    // Predicated region
    $region46: #{actor_forward.1} parent=1 // pred_check
      _
    $region47: #{actor_forward.1} parent=1 // pred_check_branch
      %670 = sbr.rel (0) target = $region49
    $region48: #{actor_forward.1} parent=1 // pred_region
      _
    $region49: #{actor_forward.1} parent=1 // pred_fallthru
      _
    // Predicated region
    $region50: #{actor_forward.1} parent=1 // pred_check
      _
    $region51: #{actor_forward.1} parent=1 // pred_check_branch
      %672 = sbr.rel (0) target = $region53
    $region52: #{actor_forward.1} parent=1 // pred_region
      _
    $region53: #{actor_forward.1} parent=1 // pred_fallthru
      _
    %673 = vsyncpa [#allocation3], 1
    %674 = vsyncpa [#allocation5], 1

</llo_original>
